<compile_context>
chip_gen: v7x
topology: tpu7x:2x2x1
jax: 0.10.0
libtpu: 0.0.40
codegen_flags: <defaults>
</compile_context>

<pallas_src>
import functools
import math

import jax
import jax.numpy as jnp
import numpy as np
from jax.experimental import pallas as pl
from jax.experimental.pallas import tpu as pltpu


def _round_up(x, m):
    return (x + m - 1) // m * m


def _kernel_predictor_kernel(patches_ref, wdw_ref, bdw_ref,
                             pooled_ref, wf_ref, bf_ref,
                             dwt_ref, pooled_out_ref):
    # --- depthwise-kernel predictor: one lane-dense MXU matmul per C_dw tile ---
    # (tile_cdw, KP) @ (KP, B*K*K) -> (tile_cdw, B*K*K), bias in the epilogue.
    dwt_ref[...] = (
        jnp.dot(wdw_ref[...], patches_ref[...],
                preferred_element_type=jnp.float32)
        + bdw_ref[...])

    # --- pooled path: fused (pointwise-kernel ++ bias) 1x1 convs, f32 ---
    # Tiny (B, S) @ (S, n_pad); recomputed per grid step into a per-step output
    # block so the output index map varies along the "parallel" axis (idempotent
    # writes, negligible cost; the wrapper reads block 0).
    pooled_out_ref[0] = (
        jnp.dot(pooled_ref[...], wf_ref[...],
                preferred_element_type=jnp.float32)
        + bf_ref[...])


def init_params(key, style_dim, in_channels, out_channels, groups):
    c_dw = out_channels * (in_channels // groups)
    c_pw = out_channels * (out_channels // groups)
    ks = jax.random.split(key, 6)
    scale = 0.1
    return dict(
        w_dw=scale * jax.random.normal(ks[0], (c_dw, style_dim, 3, 3), jnp.float32),
        b_dw=scale * jax.random.normal(ks[1], (c_dw,), jnp.float32),
        w_pw=scale * jax.random.normal(ks[2], (c_pw, style_dim, 1, 1), jnp.float32),
        b_pw=scale * jax.random.normal(ks[3], (c_pw,), jnp.float32),
        w_b=scale * jax.random.normal(ks[4], (out_channels, style_dim, 1, 1), jnp.float32),
        b_b=scale * jax.random.normal(ks[5], (out_channels,), jnp.float32),
    )


def kernel_predictor_forward(params, w_nchw, *, in_channels, out_channels,
                             groups, style_kernel, tile_cdw=None):
    B, S, H, W = w_nchw.shape
    assert H == style_kernel and W == style_kernel, "spatial dims must equal style_kernel"
    K = style_kernel
    c_dw = out_channels * (in_channels // groups)
    c_pw = out_channels * (out_channels // groups)
    n_fused = c_pw + out_channels

    N = B * K * K                        # dw matmul N (lane) dim
    KP = _round_up(9 * S, 16)            # contraction dim, bf16 sublane tile
    n_pad = _round_up(n_fused, 128)      # lane-dense pooled output width

    if tile_cdw is None:
        # Bigger tiles => fewer grid steps; cap so 2x(double-buffered wdw bf16 +
        # f32 out tile) stays comfortably inside v7x's 64 MiB VMEM.
        tile_cdw = min(256, _round_up(c_dw, 8))
    c_dw_pad = _round_up(c_dw, tile_cdw)
    num_tiles = c_dw_pad // tile_cdw

    x = w_nchw.astype(jnp.float32)

    # --- im2col: single fused patch-extraction op (reflect pad done up front) ---
    xpad = jnp.pad(x, ((0, 0), (0, 0), (1, 1), (1, 1)), mode="reflect")
    # Patch channel order is (s, ky, kx) (channel-major, taps row-major), which
    # matches params["w_dw"].reshape(c_dw, S*9).  The CNHW out spec puts the
    # contraction dim leading, so no transpose is needed before the reshape.
    patches = jax.lax.conv_general_dilated_patches(
        xpad, filter_shape=(3, 3), window_strides=(1, 1), padding="VALID",
        dimension_numbers=("NCHW", "OIHW", "CNHW"))        # (9*S, B, K, K)
    patches_mat = patches.reshape(9 * S, N).astype(jnp.bfloat16)
    patches_mat = jnp.pad(patches_mat, ((0, KP - 9 * S), (0, 0)))

    # --- weight plumbing (zero-padded to the kernel's tile geometry) ---
    wdw = params["w_dw"].reshape(c_dw, 9 * S).astype(jnp.bfloat16)
    wdw = jnp.pad(wdw, ((0, c_dw_pad - c_dw), (0, KP - 9 * S)))
    bdw = jnp.pad(params["b_dw"], (0, c_dw_pad - c_dw)).reshape(c_dw_pad, 1)

    # Pooled path: AdaptiveAvgPool2d((1,1)) done in the wrapper (f32), and the
    # two 1x1 convs fused into one lane-dense-padded weight/bias pair (f32).
    pooled = jnp.mean(x, axis=(2, 3))                                   # (B, S)
    w_fused = jnp.concatenate([params["w_pw"][:, :, 0, 0].T,
                               params["w_b"][:, :, 0, 0].T], axis=1)
    w_fused = jnp.pad(w_fused, ((0, 0), (0, n_pad - n_fused)))          # (S, n_pad)
    b_fused = jnp.concatenate([params["b_pw"], params["b_b"]])
    b_fused = jnp.pad(b_fused, (0, n_pad - n_fused)).reshape(1, n_pad)

    flops = 2 * c_dw_pad * KP * N + 2 * num_tiles * B * S * n_pad
    bytes_accessed = (patches_mat.size * 2 + wdw.size * 2 + bdw.size * 4
                      + pooled.size * 4 + w_fused.size * 4 + b_fused.size * 4
                      + c_dw_pad * N * 4 + num_tiles * B * n_pad * 4)

    # Explicit scoped-VMEM budget (v5e default is only 16 MiB): resident patches
    # + double-buffered tiles, with a 2x safety margin and a 32 MiB floor.
    def _padded_bytes(shape, itemsize):
        s = (1,) * (2 - len(shape)) + tuple(shape)
        lead = math.prod(s[:-2]) if len(s) > 2 else 1
        return lead * _round_up(s[-2], 8) * _round_up(s[-1], 128) * itemsize

    vmem_need = 2 * (_padded_bytes((KP, N), 2)
                     + _padded_bytes((tile_cdw, KP), 2)
                     + _padded_bytes((tile_cdw, 1), 4)
                     + _padded_bytes((B, S), 4)
                     + _padded_bytes((S, n_pad), 4)
                     + _padded_bytes((1, n_pad), 4)
                     + _padded_bytes((tile_cdw, N), 4)
                     + _padded_bytes((1, B, n_pad), 4))
    vmem_limit = int(max(32 * 1024 * 1024, 2 * vmem_need))

    dwt, pooled_out = pl.pallas_call(
        _kernel_predictor_kernel,
        grid=(num_tiles,),
        in_specs=[
            pl.BlockSpec((KP, N), lambda i: (0, 0)),           # patches: VMEM-resident
            pl.BlockSpec((tile_cdw, KP), lambda i: (i, 0)),    # wdw tile (streamed)
            pl.BlockSpec((tile_cdw, 1), lambda i: (i, 0)),     # bdw tile
            pl.BlockSpec((B, S), lambda i: (0, 0)),            # pooled (resident)
            pl.BlockSpec((S, n_pad), lambda i: (0, 0)),        # fused pw/bias weights
            pl.BlockSpec((1, n_pad), lambda i: (0, 0)),        # fused pw/bias biases
        ],
        out_specs=(
            pl.BlockSpec((tile_cdw, N), lambda i: (i, 0)),
            pl.BlockSpec((1, B, n_pad), lambda i: (i, 0, 0)),
        ),
        out_shape=(
            # TODO(synk): emit bf16 here if the downstream modulated conv consumes
            # bf16 weights (halves writeback bytes); kept f32 to match the module.
            jax.ShapeDtypeStruct((c_dw_pad, N), jnp.float32),
            jax.ShapeDtypeStruct((num_tiles, B, n_pad), jnp.float32),
        ),
        compiler_params=pltpu.CompilerParams(
            dimension_semantics=("parallel",),
            vmem_limit_bytes=vmem_limit),
        cost_estimate=pl.CostEstimate(flops=flops, transcendentals=0,
                                      bytes_accessed=bytes_accessed),
    )(patches_mat, wdw, bdw, pooled, w_fused, b_fused)

    # Lane-dense (C_dw, B*K*K) -> (B, out_c, in_c//groups, K, K).
    # TODO(synk): drop this transpose if the downstream modulated conv can take the
    # channels-first (C_dw, B, K, K) layout directly.
    dw_kernel = jnp.transpose(dwt[:c_dw].reshape(c_dw, B, K, K),
                              (1, 0, 2, 3)).reshape(
        B, out_channels, in_channels // groups, K, K)
    pooled0 = pooled_out[0]
    pw_kernel = pooled0[:, :c_pw].reshape(
        B, out_channels, out_channels // groups, 1, 1)
    bias = pooled0[:, c_pw:n_fused]
    return dw_kernel, pw_kernel, bias


def reference_forward(params, w_nchw, *, in_channels, out_channels, groups,
                      style_kernel):
    # Pure-JAX reference (XLA conv, f32 HIGHEST precision) for correctness.
    B = w_nchw.shape[0]
    K = style_kernel
    xpad = jnp.pad(w_nchw, ((0, 0), (0, 0), (1, 1), (1, 1)), mode="reflect")
    dw = jax.lax.conv_general_dilated(
        xpad, params["w_dw"], window_strides=(1, 1), padding="VALID",
        dimension_numbers=("NCHW", "OIHW", "NCHW"),
        precision=jax.lax.Precision.HIGHEST)
    dw = dw + params["b_dw"][None, :, None, None]
    dw = dw.reshape(B, out_channels, in_channels // groups, K, K)
    pooled = jnp.mean(w_nchw, axis=(2, 3))
    pw = pooled @ params["w_pw"][:, :, 0, 0].T + params["b_pw"]
    pw = pw.reshape(B, out_channels, out_channels // groups, 1, 1)
    bias = pooled @ params["w_b"][:, :, 0, 0].T + params["b_b"]
    return dw, pw, bias


if __name__ == "__main__":
    style_dim, in_channels, out_channels, groups, style_kernel = 4, 8, 8, 4, 8
    batch = 2

    key = jax.random.PRNGKey(0)
    k_params, k_x = jax.random.split(key)
    params = init_params(k_params, style_dim, in_channels, out_channels, groups)
    # w must have spatial dims == style_kernel (implied by the .view in forward).
    w = jax.random.normal(k_x, (batch, style_dim, style_kernel, style_kernel),
                          jnp.float32)

    cfg = dict(in_channels=in_channels, out_channels=out_channels, groups=groups,
               style_kernel=style_kernel)
    # tile_cdw=8 -> 2-step C_dw grid at these toy sizes, exercising the tiled path.
    fwd = jax.jit(functools.partial(kernel_predictor_forward, tile_cdw=8, **cfg))
    dw_k, pw_k, bias_k = fwd(params, w)
    jax.block_until_ready((dw_k, pw_k, bias_k))

    dw_r, pw_r, bias_r = reference_forward(params, w, **cfg)
    # dw path: bf16 MXU operands + f32 accumulation vs an f32 HIGHEST reference
    # (observed ~1e-3-scale error).  Pooled path is f32 end-to-end.
    np.testing.assert_allclose(np.asarray(dw_k), np.asarray(dw_r), rtol=1e-2, atol=1e-2)
    np.testing.assert_allclose(np.asarray(pw_k), np.asarray(pw_r), rtol=1e-2, atol=1e-2)
    np.testing.assert_allclose(np.asarray(bias_k), np.asarray(bias_r), rtol=1e-2, atol=1e-2)

    assert dw_k.shape == (batch, out_channels, in_channels // groups,
                          style_kernel, style_kernel)
    assert pw_k.shape == (batch, out_channels, out_channels // groups, 1, 1)
    assert bias_k.shape == (batch, out_channels)

    print("KERNEL_OK")
</pallas_src>

<mosaic_0001>
module attributes {stable_mosaic.version = 11 : i64} {
  func.func @_kernel_predictor_kernel(%arg0: i32, %arg1: memref<48x128xbf16, #tpu.memory_space<vmem>>, %arg2: memref<8x48xbf16, #tpu.memory_space<vmem>>, %arg3: memref<8x1xf32, #tpu.memory_space<vmem>>, %arg4: memref<2x4xf32, #tpu.memory_space<vmem>>, %arg5: memref<4x128xf32, #tpu.memory_space<vmem>>, %arg6: memref<1x128xf32, #tpu.memory_space<vmem>>, %arg7: memref<8x128xf32, #tpu.memory_space<vmem>>, %arg8: memref<1x2x128xf32, #tpu.memory_space<vmem>>) attributes {dimension_semantics = [#tpu.dimension_semantics<parallel>], iteration_bounds = array<i64: 2>, scalar_prefetch = 0 : i64, scratch_operands = 0 : i64, tpu.core_type = #tpu.core_type<tc>, window_params = [{pipeline_mode = #tpu.pipeline_mode<synchronous>, transform_indices = @transform_0, window_bounds = array<i64: 48, 128>}, {transform_indices = @transform_1, window_bounds = array<i64: 8, 48>}, {transform_indices = @transform_2, window_bounds = array<i64: 8, 1>}, {pipeline_mode = #tpu.pipeline_mode<synchronous>, transform_indices = @transform_3, window_bounds = array<i64: 2, 4>}, {pipeline_mode = #tpu.pipeline_mode<synchronous>, transform_indices = @transform_4, window_bounds = array<i64: 4, 128>}, {pipeline_mode = #tpu.pipeline_mode<synchronous>, transform_indices = @transform_5, window_bounds = array<i64: 1, 128>}, {transform_indices = @transform_6, window_bounds = array<i64: 8, 128>}, {transform_indices = @transform_7, window_bounds = array<i64: 1, 2, 128>}]} {
    %c0 = arith.constant 0 : index
    %c0_0 = arith.constant 0 : index
    %0 = vector.load %arg2[%c0, %c0_0] : memref<8x48xbf16, #tpu.memory_space<vmem>>, vector<8x48xbf16>
    %c0_1 = arith.constant 0 : index
    %c0_2 = arith.constant 0 : index
    %1 = vector.load %arg1[%c0_1, %c0_2] : memref<48x128xbf16, #tpu.memory_space<vmem>>, vector<48x128xbf16>
    %cst = arith.constant dense<0.000000e+00> : vector<8x128xf32>
    %2 = tpu.matmul %0, %1, %cst {dimension_numbers = #tpu.dot_dimension_numbers<[1], [0], [0], [1], [0, 0, 1, 1], [], []>} : vector<8x48xbf16>, vector<48x128xbf16>, vector<8x128xf32> -> vector<8x128xf32>
    %c0_3 = arith.constant 0 : index
    %c0_4 = arith.constant 0 : index
    %3 = vector.load %arg3[%c0_3, %c0_4] : memref<8x1xf32, #tpu.memory_space<vmem>>, vector<8x1xf32>
    %4 = vector.broadcast %3 : vector<8x1xf32> to vector<8x128xf32>
    %5 = arith.addf %2, %4 : vector<8x128xf32>
    %c0_5 = arith.constant 0 : index
    %c0_6 = arith.constant 0 : index
    %6 = vector.load %arg7[%c0_5, %c0_6] : memref<8x128xf32, #tpu.memory_space<vmem>>, vector<8x128xf32>
    tpu.vector_store %arg7[%c0_5, %c0_6], %5 {strides = array<i32>} : memref<8x128xf32, #tpu.memory_space<vmem>>, vector<8x128xf32>,
    %c0_7 = arith.constant 0 : index
    %c0_8 = arith.constant 0 : index
    %7 = vector.load %arg4[%c0_7, %c0_8] : memref<2x4xf32, #tpu.memory_space<vmem>>, vector<2x4xf32>
    %c0_9 = arith.constant 0 : index
    %c0_10 = arith.constant 0 : index
    %8 = vector.load %arg5[%c0_9, %c0_10] : memref<4x128xf32, #tpu.memory_space<vmem>>, vector<4x128xf32>
    %cst_11 = arith.constant dense<0.000000e+00> : vector<2x128xf32>
    %9 = tpu.matmul %7, %8, %cst_11 {dimension_numbers = #tpu.dot_dimension_numbers<[1], [0], [0], [1], [0, 0, 1, 1], [], []>} : vector<2x4xf32>, vector<4x128xf32>, vector<2x128xf32> -> vector<2x128xf32>
    %c0_12 = arith.constant 0 : index
    %c0_13 = arith.constant 0 : index
    %10 = vector.load %arg6[%c0_12, %c0_13] : memref<1x128xf32, #tpu.memory_space<vmem>>, vector<1x128xf32>
    %11 = vector.broadcast %10 : vector<1x128xf32> to vector<2x128xf32>
    %12 = arith.addf %9, %11 : vector<2x128xf32>
    %c0_14 = arith.constant 0 : index
    %c0_15 = arith.constant 0 : index
    %c0_16 = arith.constant 0 : index
    %13 = vector.load %arg8[%c0_14, %c0_15, %c0_16] : memref<1x2x128xf32, #tpu.memory_space<vmem>>, vector<1x2x128xf32>
    %14 = vector.shape_cast %13 : vector<1x2x128xf32> to vector<2x128xf32>
    %15 = vector.shape_cast %12 : vector<2x128xf32> to vector<1x2x128xf32>
    tpu.vector_store %arg8[%c0_14, %c0_15, %c0_16], %15 {strides = array<i32>} : memref<1x2x128xf32, #tpu.memory_space<vmem>>, vector<1x2x128xf32>,
    return
  }
  func.func @transform_0(%arg0: i32) -> (i32, i32) {
    %c0_i32 = arith.constant 0 : i32
    %c0_i32_0 = arith.constant 0 : i32
    %c0_i32_1 = arith.constant 0 : i32
    return %c0_i32, %c0_i32_0 : i32, i32
  }
  func.func @transform_1(%arg0: i32) -> (i32, i32) {
    %c0_i32 = arith.constant 0 : i32
    %c0_i32_0 = arith.constant 0 : i32
    return %arg0, %c0_i32 : i32, i32
  }
  func.func @transform_2(%arg0: i32) -> (i32, i32) {
    %c0_i32 = arith.constant 0 : i32
    %c0_i32_0 = arith.constant 0 : i32
    return %arg0, %c0_i32 : i32, i32
  }
  func.func @transform_3(%arg0: i32) -> (i32, i32) {
    %c0_i32 = arith.constant 0 : i32
    %c0_i32_0 = arith.constant 0 : i32
    %c0_i32_1 = arith.constant 0 : i32
    return %c0_i32, %c0_i32_0 : i32, i32
  }
  func.func @transform_4(%arg0: i32) -> (i32, i32) {
    %c0_i32 = arith.constant 0 : i32
    %c0_i32_0 = arith.constant 0 : i32
    %c0_i32_1 = arith.constant 0 : i32
    return %c0_i32, %c0_i32_0 : i32, i32
  }
  func.func @transform_5(%arg0: i32) -> (i32, i32) {
    %c0_i32 = arith.constant 0 : i32
    %c0_i32_0 = arith.constant 0 : i32
    %c0_i32_1 = arith.constant 0 : i32
    return %c0_i32, %c0_i32_0 : i32, i32
  }
  func.func @transform_6(%arg0: i32) -> (i32, i32) {
    %c0_i32 = arith.constant 0 : i32
    %c0_i32_0 = arith.constant 0 : i32
    return %arg0, %c0_i32 : i32, i32
  }
  func.func @transform_7(%arg0: i32) -> (i32, i32, i32) {
    %c0_i32 = arith.constant 0 : i32
    %c0_i32_0 = arith.constant 0 : i32
    %c0_i32_1 = arith.constant 0 : i32
    return %arg0, %c0_i32, %c0_i32_0 : i32, i32, i32
  }
}

</mosaic_0001>

<llo_original>
// kernel: kernel_predictor_forward.1
$region0: #{kernel_predictor_forward.1}
  #allocation0 [shape = 'u32[]', space=smem, size = 0x4, offset = 0x4, fixed_abs, tag = 'smem constant byte address 0x4 - core index']
  #allocation1 [shape = 'u32[144,128]{1,0:T(1,128)}', space=vmem, size = 0x12000, scoped, tag = 'internal scratch']
  %s0 = inlined_call_operand.vmem [shape: bf16[48,128], index: 0, kind: input, shape index: {}]
  %s1 = inlined_call_operand.vmem [shape: bf16[16,48], index: 1, kind: input, shape index: {}]
  %s2 = inlined_call_operand.vmem [shape: f32[16,1], index: 2, kind: input, shape index: {}]
  %s3 = inlined_call_operand.vmem [shape: f32[2,4], index: 3, kind: input, shape index: {}]
  %s4 = inlined_call_operand.vmem [shape: f32[4,128], index: 4, kind: input, shape index: {}]
  %s5 = inlined_call_operand.vmem [shape: f32[1,128], index: 5, kind: input, shape index: {}]
  %s6 = inlined_call_operand.vmem [shape: f32[16,128], index: 6, kind: output, shape index: {0}]
  %s7 = inlined_call_operand.vmem [shape: f32[2,2,128], index: 7, kind: output, shape index: {1}]
  %8 = xla_tuple %s6, %s7
  %s9 = sld [smem:[#allocation0]]
  $region65: #{kernel_predictor_forward.1} parent=0
    _
  %s11 = ssub.s32 1, %s9
  %s12 = scalar_select 0, %s11, %s9
  loop: start=0, step=1, limit=4
  $region2: #{kernel_predictor_forward.1} parent=0 // loop_pre_header
    _
  $region3: #{kernel_predictor_forward.1} parent=0 // loop_header
    %s14 = sphi 0, %s18
    %p15 = scmp.ge.s32.totalorder %s14, 4
    %s22 = sphi 0, %s22
    %s24 = sphi 0, %s22
    %s25 = sphi 0, %s24
    %s39 = sphi 0, %s25
    %s45 = sphi 0, %s47
    %s48 = sphi 0, %s45
    %s49 = sphi 0, %s48
    %s65 = sphi 0, %s49
    %s71 = sphi 0, %s73
    %s74 = sphi 0, %s71
    %s75 = sphi 0, %s74
    %s91 = sphi 0, %s75
    %s95 = sphi 0, %s95
    %s97 = sphi 0, %s95
    %s98 = sphi 0, %s97
    %s112 = sphi 0, %s98
    %s116 = sphi 0, %s116
    %s118 = sphi 0, %s116
    %s119 = sphi 0, %s118
    %s133 = sphi 0, %s119
    %s137 = sphi 0, %s137
    %s139 = sphi 0, %s137
    %s140 = sphi 0, %s139
    %s154 = sphi 0, %s140
    %s160 = sphi 0, %s162
    %s163 = sphi 0, %s160
    %s164 = sphi 0, %s163
    %s180 = sphi 0, %s164
    %s186 = sphi 0, %s188
    %s189 = sphi 0, %s186
    %s190 = sphi 0, %s189
    %s206 = sphi 0, %s190
  $region4: #{kernel_predictor_forward.1} parent=0 // loop_header_branch
    %17 = sbr.rel (%p15) target = $region8
  $region5: #{kernel_predictor_forward.1} parent=0 // loop_body
    %s19 = ssub.s32 %s14, 1
    %s20 = ssub.s32 %s14, 2
    %s21 = sadd.s32 %s14, 1
    %s23 = sadd.s32 %s22, 1
    %p26 = scmp.eq.s32.totalorder %s14, 1
    %p27 = scmp.ne.s32.totalorder %s22, %s24
    %p28 = scmp.eq.s32.totalorder %s14, 0
    %p29 = por %p27, %p28
    %p30 = scmp.ne.s32.totalorder %s22, %s24
    %p31 = scmp.eq.s32.totalorder %s19, 1
    %p32 = por %p30, %p31
    %p33 = scmp.ne.s32.totalorder %s24, %s25
    %p34 = scmp.eq.s32.totalorder %s19, 0
    %p35 = por %p33, %p34
    %p36 = scmp.ne.s32.totalorder %s24, %s25
    %p37 = scmp.eq.s32.totalorder %s20, 1
    %p38 = por %p36, %p37
    %p40 = scmp.ne.s32.totalorder %s25, %s39
    %p41 = scmp.eq.s32.totalorder %s20, 0
    %p42 = por %p40, %p41
    %s43 = ssub.s32 %s14, %s21
    %p44 = scmp.eq.s32.totalorder %s43, 0
    %s46 = sadd.s32 %s45, 1
    %s47 = scalar_select %p44, %s45, %s46
    %p50 = pneg %p44
    %p51 = scmp.eq.s32.totalorder %s14, 1
    %p52 = por %p50, %p51
    %p53 = scmp.ne.s32.totalorder %s45, %s48
    %p54 = scmp.eq.s32.totalorder %s14, 0
    %p55 = por %p53, %p54
    %p56 = scmp.ne.s32.totalorder %s45, %s48
    %p57 = scmp.eq.s32.totalorder %s19, 1
    %p58 = por %p56, %p57
    %p59 = scmp.ne.s32.totalorder %s48, %s49
    %p60 = scmp.eq.s32.totalorder %s19, 0
    %p61 = por %p59, %p60
    %p62 = scmp.ne.s32.totalorder %s48, %s49
    %p63 = scmp.eq.s32.totalorder %s20, 1
    %p64 = por %p62, %p63
    %p66 = scmp.ne.s32.totalorder %s49, %s65
    %p67 = scmp.eq.s32.totalorder %s20, 0
    %p68 = por %p66, %p67
    %s69 = ssub.s32 %s14, %s21
    %p70 = scmp.eq.s32.totalorder %s69, 0
    %s72 = sadd.s32 %s71, 1
    %s73 = scalar_select %p70, %s71, %s72
    %p76 = pneg %p70
    %p77 = scmp.eq.s32.totalorder %s14, 1
    %p78 = por %p76, %p77
    %p79 = scmp.ne.s32.totalorder %s71, %s74
    %p80 = scmp.eq.s32.totalorder %s14, 0
    %p81 = por %p79, %p80
    %p82 = scmp.ne.s32.totalorder %s71, %s74
    %p83 = scmp.eq.s32.totalorder %s19, 1
    %p84 = por %p82, %p83
    %p85 = scmp.ne.s32.totalorder %s74, %s75
    %p86 = scmp.eq.s32.totalorder %s19, 0
    %p87 = por %p85, %p86
    %p88 = scmp.ne.s32.totalorder %s74, %s75
    %p89 = scmp.eq.s32.totalorder %s20, 1
    %p90 = por %p88, %p89
    %p92 = scmp.ne.s32.totalorder %s75, %s91
    %p93 = scmp.eq.s32.totalorder %s20, 0
    %p94 = por %p92, %p93
    %s96 = sadd.s32 %s95, 1
    %p99 = scmp.eq.s32.totalorder %s14, 1
    %p100 = scmp.ne.s32.totalorder %s95, %s97
    %p101 = scmp.eq.s32.totalorder %s14, 0
    %p102 = por %p100, %p101
    %p103 = scmp.ne.s32.totalorder %s95, %s97
    %p104 = scmp.eq.s32.totalorder %s19, 1
    %p105 = por %p103, %p104
    %p106 = scmp.ne.s32.totalorder %s97, %s98
    %p107 = scmp.eq.s32.totalorder %s19, 0
    %p108 = por %p106, %p107
    %p109 = scmp.ne.s32.totalorder %s97, %s98
    %p110 = scmp.eq.s32.totalorder %s20, 1
    %p111 = por %p109, %p110
    %p113 = scmp.ne.s32.totalorder %s98, %s112
    %p114 = scmp.eq.s32.totalorder %s20, 0
    %p115 = por %p113, %p114
    %s117 = sadd.s32 %s116, 1
    %p120 = scmp.eq.s32.totalorder %s14, 1
    %p121 = scmp.ne.s32.totalorder %s116, %s118
    %p122 = scmp.eq.s32.totalorder %s14, 0
    %p123 = por %p121, %p122
    %p124 = scmp.ne.s32.totalorder %s116, %s118
    %p125 = scmp.eq.s32.totalorder %s19, 1
    %p126 = por %p124, %p125
    %p127 = scmp.ne.s32.totalorder %s118, %s119
    %p128 = scmp.eq.s32.totalorder %s19, 0
    %p129 = por %p127, %p128
    %p130 = scmp.ne.s32.totalorder %s118, %s119
    %p131 = scmp.eq.s32.totalorder %s20, 1
    %p132 = por %p130, %p131
    %p134 = scmp.ne.s32.totalorder %s119, %s133
    %p135 = scmp.eq.s32.totalorder %s20, 0
    %p136 = por %p134, %p135
    %s138 = sadd.s32 %s137, 1
    %p141 = scmp.eq.s32.totalorder %s14, 1
    %p142 = scmp.ne.s32.totalorder %s137, %s139
    %p143 = scmp.eq.s32.totalorder %s14, 0
    %p144 = por %p142, %p143
    %p145 = scmp.ne.s32.totalorder %s137, %s139
    %p146 = scmp.eq.s32.totalorder %s19, 1
    %p147 = por %p145, %p146
    %p148 = scmp.ne.s32.totalorder %s139, %s140
    %p149 = scmp.eq.s32.totalorder %s19, 0
    %p150 = por %p148, %p149
    %p151 = scmp.ne.s32.totalorder %s139, %s140
    %p152 = scmp.eq.s32.totalorder %s20, 1
    %p153 = por %p151, %p152
    %p155 = scmp.ne.s32.totalorder %s140, %s154
    %p156 = scmp.eq.s32.totalorder %s20, 0
    %p157 = por %p155, %p156
    %s158 = ssub.s32 %s14, %s21
    %p159 = scmp.eq.s32.totalorder %s158, 0
    %s161 = sadd.s32 %s160, 1
    %s162 = scalar_select %p159, %s160, %s161
    %p165 = pneg %p159
    %p166 = scmp.eq.s32.totalorder %s14, 1
    %p167 = por %p165, %p166
    %p168 = scmp.ne.s32.totalorder %s160, %s163
    %p169 = scmp.eq.s32.totalorder %s14, 0
    %p170 = por %p168, %p169
    %p171 = scmp.ne.s32.totalorder %s160, %s163
    %p172 = scmp.eq.s32.totalorder %s19, 1
    %p173 = por %p171, %p172
    %p174 = scmp.ne.s32.totalorder %s163, %s164
    %p175 = scmp.eq.s32.totalorder %s19, 0
    %p176 = por %p174, %p175
    %p177 = scmp.ne.s32.totalorder %s163, %s164
    %p178 = scmp.eq.s32.totalorder %s20, 1
    %p179 = por %p177, %p178
    %p181 = scmp.ne.s32.totalorder %s164, %s180
    %p182 = scmp.eq.s32.totalorder %s20, 0
    %p183 = por %p181, %p182
    %s184 = ssub.s32 %s14, %s21
    %p185 = scmp.eq.s32.totalorder %s184, 0
    %s187 = sadd.s32 %s186, 1
    %s188 = scalar_select %p185, %s186, %s187
    %p191 = pneg %p185
    %p192 = scmp.eq.s32.totalorder %s14, 1
    %p193 = por %p191, %p192
    %p194 = scmp.ne.s32.totalorder %s186, %s189
    %p195 = scmp.eq.s32.totalorder %s14, 0
    %p196 = por %p194, %p195
    %p197 = scmp.ne.s32.totalorder %s186, %s189
    %p198 = scmp.eq.s32.totalorder %s19, 1
    %p199 = por %p197, %p198
    %p200 = scmp.ne.s32.totalorder %s189, %s190
    %p201 = scmp.eq.s32.totalorder %s19, 0
    %p202 = por %p200, %p201
    %p203 = scmp.ne.s32.totalorder %s189, %s190
    %p204 = scmp.eq.s32.totalorder %s20, 1
    %p205 = por %p203, %p204
    %p207 = scmp.ne.s32.totalorder %s190, %s206
    %p208 = scmp.eq.s32.totalorder %s20, 0
    %p209 = por %p207, %p208
    %p210 = scmp.le.s32.totalorder 1, %s14
    %p211 = scmp.lt.s32.totalorder %s14, 3
    %p212 = pnand %p210, %p211
    %p213 = pneg %p212
    // Predicated region
    $region9: #{kernel_predictor_forward.1} parent=5 // pred_check
      _
    $region10: #{kernel_predictor_forward.1} parent=5 // pred_check_branch
      %215 = sbr.rel (%p212) target = $region12
    $region11: #{kernel_predictor_forward.1} parent=5 // pred_region
      %s216 = ssub.s32 %s14, 1
      // Predicated region
      $region13: #{kernel_predictor_forward.1} parent=11 // pred_check
        %p217 = pneg %p35
      $region14: #{kernel_predictor_forward.1} parent=11 // pred_check_branch
        %219 = sbr.rel (%p217) target = $region16
      $region15: #{kernel_predictor_forward.1} parent=11 // pred_region
        _
      $region16: #{kernel_predictor_forward.1} parent=11 // pred_fallthru
        _
      // Predicated region
      $region17: #{kernel_predictor_forward.1} parent=11 // pred_check
        %p220 = pneg %p108
      $region18: #{kernel_predictor_forward.1} parent=11 // pred_check_branch
        %222 = sbr.rel (%p220) target = $region20
      $region19: #{kernel_predictor_forward.1} parent=11 // pred_region
        _
      $region20: #{kernel_predictor_forward.1} parent=11 // pred_fallthru
        _
      // Predicated region
      $region21: #{kernel_predictor_forward.1} parent=11 // pred_check
        %p223 = pneg %p129
      $region22: #{kernel_predictor_forward.1} parent=11 // pred_check_branch
        %225 = sbr.rel (%p223) target = $region24
      $region23: #{kernel_predictor_forward.1} parent=11 // pred_region
        _
      $region24: #{kernel_predictor_forward.1} parent=11 // pred_fallthru
        _
      // Predicated region
      $region25: #{kernel_predictor_forward.1} parent=11 // pred_check
        %p226 = pneg %p150
      $region26: #{kernel_predictor_forward.1} parent=11 // pred_check_branch
        %228 = sbr.rel (%p226) target = $region28
      $region27: #{kernel_predictor_forward.1} parent=11 // pred_region
        _
      $region28: #{kernel_predictor_forward.1} parent=11 // pred_fallthru
        _
    $region12: #{kernel_predictor_forward.1} parent=5 // pred_fallthru
      _
    %p229 = scmp.lt.s32.totalorder %s14, 2
    // Predicated region
    $region29: #{kernel_predictor_forward.1} parent=5 // pred_check
      %p230 = pneg %p229
    $region30: #{kernel_predictor_forward.1} parent=5 // pred_check_branch
      %232 = sbr.rel (%p230) target = $region32
    $region31: #{kernel_predictor_forward.1} parent=5 // pred_region
      // Predicated region
      $region33: #{kernel_predictor_forward.1} parent=31 // pred_check
        %p233 = pneg %p55
      $region34: #{kernel_predictor_forward.1} parent=31 // pred_check_branch
        %235 = sbr.rel (%p233) target = $region36
      $region35: #{kernel_predictor_forward.1} parent=31 // pred_region
        %p236 = scmp.lt.s32.totalorder %s14, 1
        %s237 = scalar_select %p236, %s14, 1
        %s238 = smul.addr %s237, 4
        %s239 = scalar_lea.vmem %s1, %s238
      $region36: #{kernel_predictor_forward.1} parent=31 // pred_fallthru
        _
      // Predicated region
      $region37: #{kernel_predictor_forward.1} parent=31 // pred_check
        %p240 = pneg %p81
      $region38: #{kernel_predictor_forward.1} parent=31 // pred_check_branch
        %242 = sbr.rel (%p240) target = $region40
      $region39: #{kernel_predictor_forward.1} parent=31 // pred_region
        %p243 = scmp.lt.s32.totalorder %s14, 1
        %s244 = scalar_select %p243, %s14, 1
        %s245 = smul.addr %s244, 8
        %s246 = scalar_lea.vmem %s2, %s245
      $region40: #{kernel_predictor_forward.1} parent=31 // pred_fallthru
        _
    $region32: #{kernel_predictor_forward.1} parent=5 // pred_fallthru
      _
    %p247 = scmp.le.s32.totalorder 1, %s14
    %p248 = scmp.lt.s32.totalorder %s14, 3
    %p249 = pnand %p247, %p248
    %p250 = pneg %p249
    // Predicated region
    $region41: #{kernel_predictor_forward.1} parent=5 // pred_check
      _
    $region42: #{kernel_predictor_forward.1} parent=5 // pred_check_branch
      %252 = sbr.rel (%p249) target = $region44
    $region43: #{kernel_predictor_forward.1} parent=5 // pred_region
      %s253 = ssub.s32 %s14, 1
      %p254 = pneg %p35
      %p255 = pneg %p32
      %p256 = scmp.lt.s32.totalorder %s19, 1
      %s257 = scalar_select %p256, %s19, 1
      %s258 = smul.addr %s257, 4
      %s259 = scalar_lea.vmem %s1, %s258
      %p260 = pneg %p61
      %p261 = pneg %p58
      %p262 = scmp.lt.s32.totalorder %s19, 1
      %s263 = scalar_select %p262, %s19, 1
      %s264 = smul.addr %s263, 8
      %s265 = scalar_lea.vmem %s2, %s264
      %p266 = pneg %p87
      %p267 = pneg %p84
      %p268 = pneg %p108
      %p269 = pneg %p105
      %p270 = pneg %p129
      %p271 = pneg %p126
      %p272 = pneg %p150
      %p273 = pneg %p147
      %p274 = pneg %p176
      %p275 = pneg %p173
      %p276 = scmp.lt.s32.totalorder %s19, 1
      %s277 = scalar_select %p276, %s19, 1
      %s278 = smul.addr %s277, 8
      %s279 = scalar_lea.vmem %s6, %s278
      %p280 = pneg %p202
      %p281 = pneg %p199
      %p282 = scmp.lt.s32.totalorder %s19, 1
      %s283 = scalar_select %p282, %s19, 1
      %s284 = smul.addr %s283, 2
      %s285 = scalar_lea.vmem %s7, %s284
      %p286 = scmp.lt.s32.totalorder %s19, 1
      %s287 = scalar_select %p286, %s19, 1
      %s288 = smul.addr %s287, 4
      %s289 = scalar_lea.vmem %s1, %s288
      %p290 = scmp.lt.s32.totalorder %s19, 1
      %s291 = scalar_select %p290, %s19, 1
      %s292 = smul.addr %s291, 8
      %s293 = scalar_lea.vmem %s2, %s292
      %p294 = scmp.lt.s32.totalorder %s19, 1
      %s295 = scalar_select %p294, %s19, 1
      %s296 = smul.addr %s295, 8
      %s297 = scalar_lea.vmem %s6, %s296
      %p298 = scmp.lt.s32.totalorder %s19, 1
      %s299 = scalar_select %p298, %s19, 1
      %s300 = smul.addr %s299, 2
      %s301 = scalar_lea.vmem %s7, %s300
      %v303 = vld [vmem:[%s289] sm:$0xf]
      %v304 = vld [vmem:[%s0] sm:$0xf]
      %v305 = vld [vmem:[%s0 + $0x4] sm:$0xf]
      %v306 = vld [vmem:[%s0 + $0x8] sm:$0xf]
      %v307 = vld [vmem:[%s0 + $0xc] sm:$0xf]
      %v308 = vld [vmem:[%s0 + $0x10] sm:$0xf]
      %v309 = vld [vmem:[%s0 + $0x14] sm:$0xf]
      %v310 = vld [vmem:[%s293] sm:$0xff]
      %312 = vset.pattern.permute.xlu0 0
      %313 = vperm.xlu0 %312, %v310
      %v314 = vpop.permute.xlu0 %313
      %v322 = vunpack.c.l.b16 %v304
      %v323 = vunpack.c.l.b16 %v305
      %v324 = vunpack.c.l.b16 %v306
      %v325 = vunpack.c.l.b16 %v307
      %v326 = vunpack.c.l.b16 %v308
      %v327 = vunpack.c.l.b16 %v309
      %v328 = vpack.c.b16 %v323, %v322
      %v329 = vpack.c.b16 %v325, %v324
      %v330 = vpack.c.b16 %v327, %v326
      %vm334 = vcmask 392192
      %v336 = vsel %vm334, %v303, 0
      %338 = vmatprep.subr.bf16.mxu0 0
      %339 = vmatpush1.bf16.msra.mxu0 %v328
      %340 = vmatprep.subr.bf16.mxu0 0
      %341 = vmatpush1.bf16.msra.mxu0 %v329
      %342 = vmatprep.subr.bf16.mxu0 0
      %343 = vmatpush1.bf16.msra.mxu0 %v330
      %344 = vmatprep.subr.bf16.mxu0 0
      %345 = vmatpush1.bf16.msra.mxu0 0
      %346 = vmatprep.subr.bf16.mxu0 0
      %347 = vmatpush1.bf16.msra.mxu0 0
      %348 = vmatprep.subr.bf16.mxu0 0
      %349 = vmatpush1.bf16.msra.mxu0 0
      %350 = vmatprep.subr.bf16.mxu0 0
      %351 = vmatpush1.bf16.msra.mxu0 0
      %352 = vmatprep.subr.bf16.mxu0 0
      %353 = vmatpush1.bf16.msra.mxu0 0
      %354 = vmatprep.subr.bf16.mxu0 0
      %355 = vmatpush1.bf16.msra.mxu0 0
      %356 = vmatprep.subr.bf16.mxu0 0
      %357 = vmatpush1.bf16.msra.mxu0 0
      %358 = vmatprep.subr.bf16.mxu0 0
      %359 = vmatpush1.bf16.msra.mxu0 0
      %360 = vmatprep.subr.bf16.mxu0 0
      %361 = vmatpush1.bf16.msra.mxu0 0
      %362 = vmatprep.subr.bf16.mxu0 0
      %363 = vmatpush1.bf16.msra.mxu0 0
      %364 = vmatprep.subr.bf16.mxu0 0
      %365 = vmatpush1.bf16.msra.mxu0 0
      %366 = vmatprep.subr.bf16.mxu0 0
      %367 = vmatpush1.bf16.msra.mxu0 0
      %368 = vmatprep.subr.bf16.mxu0 0
      %369 = vmatpush1.bf16.msra.mxu0 0
      %370 = vmatprep.mubr.bf16.mxu0 0
      %371 = vmatmul.mubr.bf16.gmra.mrb[0].mxu0 %v336
      %v372 = vpop.f32.mrb[0].mxu0
      %v373 = vadd.f32 %v314, %v372
      %v374 = vpop.f32.mrb[0].mxu0
      %v375 = vpop.f32.mrb[0].mxu0
      %v376 = vpop.f32.mrb[0].mxu0
      %377 = vdwg.mxu0
      %378 = vst [vmem:[%s297] sm:$0xff] %v373
      %v379 = vld [vmem:[%s3] sm:$0x3]
      %v380 = vld [vmem:[%s4] sm:$0xf]
      %v381 = vld [vmem:[%s5] sm:$0x1]
      %v383 = vlaneseq
      %v384 = vshrl.u32 %v383, 7
      %v385 = vsub.s32 0, %v384
      %v386 = vrot.slane %v381, %v385
      %vm388 = vcmask 31744
      %v390 = vsel %vm388, %v379, 0
      %vm392 = vcmask 1043456
      %v394 = vsel %vm392, %v380, 0
      %396 = vmatprep.subr.mxu0 0.0
      %397 = vmatpush1.msra.mxu0 %v394
      %398 = vmatprep.subr.mxu0 0.0
      %399 = vmatpush1.msra.mxu0 0.0
      %400 = vmatprep.subr.mxu0 0.0
      %401 = vmatpush1.msra.mxu0 0.0
      %402 = vmatprep.subr.mxu0 0.0
      %403 = vmatpush1.msra.mxu0 0.0
      %404 = vmatprep.subr.mxu0 0.0
      %405 = vmatpush1.msra.mxu0 0.0
      %406 = vmatprep.subr.mxu0 0.0
      %407 = vmatpush1.msra.mxu0 0.0
      %408 = vmatprep.subr.mxu0 0.0
      %409 = vmatpush1.msra.mxu0 0.0
      %410 = vmatprep.subr.mxu0 0.0
      %411 = vmatpush1.msra.mxu0 0.0
      %412 = vmatprep.subr.mxu0 0.0
      %413 = vmatpush1.msra.mxu0 0.0
      %414 = vmatprep.subr.mxu0 0.0
      %415 = vmatpush1.msra.mxu0 0.0
      %416 = vmatprep.subr.mxu0 0.0
      %417 = vmatpush1.msra.mxu0 0.0
      %418 = vmatprep.subr.mxu0 0.0
      %419 = vmatpush1.msra.mxu0 0.0
      %420 = vmatprep.subr.mxu0 0.0
      %421 = vmatpush1.msra.mxu0 0.0
      %422 = vmatprep.subr.mxu0 0.0
      %423 = vmatpush1.msra.mxu0 0.0
      %424 = vmatprep.subr.mxu0 0.0
      %425 = vmatpush1.msra.mxu0 0.0
      %426 = vmatprep.subr.mxu0 0.0
      %427 = vmatpush1.msra.mxu0 0.0
      %428 = vmatprep.subr.mxu0 0.0
      %429 = vmatpush1.msra.mxu0 0.0
      %430 = vmatprep.subr.mxu0 0.0
      %431 = vmatpush1.msra.mxu0 0.0
      %432 = vmatprep.subr.mxu0 0.0
      %433 = vmatpush1.msra.mxu0 0.0
      %434 = vmatprep.subr.mxu0 0.0
      %435 = vmatpush1.msra.mxu0 0.0
      %436 = vmatprep.subr.mxu0 0.0
      %437 = vmatpush1.msra.mxu0 0.0
      %438 = vmatprep.subr.mxu0 0.0
      %439 = vmatpush1.msra.mxu0 0.0
      %440 = vmatprep.subr.mxu0 0.0
      %441 = vmatpush1.msra.mxu0 0.0
      %442 = vmatprep.subr.mxu0 0.0
      %443 = vmatpush1.msra.mxu0 0.0
      %444 = vmatprep.subr.mxu0 0.0
      %445 = vmatpush1.msra.mxu0 0.0
      %446 = vmatprep.subr.mxu0 0.0
      %447 = vmatpush1.msra.mxu0 0.0
      %448 = vmatprep.subr.mxu0 0.0
      %449 = vmatpush1.msra.mxu0 0.0
      %450 = vmatprep.subr.mxu0 0.0
      %451 = vmatpush1.msra.mxu0 0.0
      %452 = vmatprep.subr.mxu0 0.0
      %453 = vmatpush1.msra.mxu0 0.0
      %454 = vmatprep.subr.mxu0 0.0
      %455 = vmatpush1.msra.mxu0 0.0
      %456 = vmatprep.subr.mxu0 0.0
      %457 = vmatpush1.msra.mxu0 0.0
      %458 = vmatprep.subr.mxu0 0.0
      %459 = vmatpush1.msra.mxu0 0.0
      %460 = vmatprep.mubr.f32.mxu0 0.0
      %461 = vmatmul.mubr.f32.gmra.mrb[0].mxu0 %v390
      %v462 = vpop.f32.mrb[0].mxu0
      %v463 = vadd.f32 %v386, %v462
      %v464 = vpop.f32.mrb[0].mxu0
      %465 = vdwg.mxu0
      %466 = vst [vmem:[%s301] sm:$0x3] %v463
      %p467 = scmp.lt.s32.totalorder %s19, 1
      %s468 = scalar_select %p467, %s19, 1
      %s469 = smul.addr %s468, 8
      %s470 = scalar_lea.vmem %s6, %s469
      %p471 = scmp.lt.s32.totalorder %s19, 1
      %s472 = scalar_select %p471, %s19, 1
      %s473 = smul.addr %s472, 2
      %s474 = scalar_lea.vmem %s7, %s473
      // Predicated region
      $region45: #{kernel_predictor_forward.1} parent=43 // pred_check
        %p475 = pneg %p173
      $region46: #{kernel_predictor_forward.1} parent=43 // pred_check_branch
        %477 = sbr.rel (%p475) target = $region48
      $region47: #{kernel_predictor_forward.1} parent=43 // pred_region
        _
      $region48: #{kernel_predictor_forward.1} parent=43 // pred_fallthru
        _
      // Predicated region
      $region49: #{kernel_predictor_forward.1} parent=43 // pred_check
        %p478 = pneg %p199
      $region50: #{kernel_predictor_forward.1} parent=43 // pred_check_branch
        %480 = sbr.rel (%p478) target = $region52
      $region51: #{kernel_predictor_forward.1} parent=43 // pred_region
        _
      $region52: #{kernel_predictor_forward.1} parent=43 // pred_fallthru
        _
    $region44: #{kernel_predictor_forward.1} parent=5 // pred_fallthru
      _
    %p481 = scmp.le.s32.totalorder 2, %s14
    // Predicated region
    $region53: #{kernel_predictor_forward.1} parent=5 // pred_check
      %p482 = pneg %p481
    $region54: #{kernel_predictor_forward.1} parent=5 // pred_check_branch
      %484 = sbr.rel (%p482) target = $region56
    $region55: #{kernel_predictor_forward.1} parent=5 // pred_region
      %s485 = ssub.s32 %s14, 2
      // Predicated region
      $region57: #{kernel_predictor_forward.1} parent=55 // pred_check
        %p486 = pneg %p179
      $region58: #{kernel_predictor_forward.1} parent=55 // pred_check_branch
        %488 = sbr.rel (%p486) target = $region60
      $region59: #{kernel_predictor_forward.1} parent=55 // pred_region
        %p489 = scmp.lt.s32.totalorder %s20, 1
        %s490 = scalar_select %p489, %s20, 1
        %s491 = smul.addr %s490, 8
        %s492 = scalar_lea.vmem %s6, %s491
      $region60: #{kernel_predictor_forward.1} parent=55 // pred_fallthru
        _
      // Predicated region
      $region61: #{kernel_predictor_forward.1} parent=55 // pred_check
        %p493 = pneg %p205
      $region62: #{kernel_predictor_forward.1} parent=55 // pred_check_branch
        %495 = sbr.rel (%p493) target = $region64
      $region63: #{kernel_predictor_forward.1} parent=55 // pred_region
        %p496 = scmp.lt.s32.totalorder %s20, 1
        %s497 = scalar_select %p496, %s20, 1
        %s498 = smul.addr %s497, 2
        %s499 = scalar_lea.vmem %s7, %s498
      $region64: #{kernel_predictor_forward.1} parent=55 // pred_fallthru
        _
    $region56: #{kernel_predictor_forward.1} parent=5 // pred_fallthru
      _
  $region6: #{kernel_predictor_forward.1} parent=0 // loop_footer
    %s18 = sadd.s32 1, %s14
  $region7: #{kernel_predictor_forward.1} parent=0 // loop_footer_branch
    %13 = sbr.rel target = $region3
  $region8: #{kernel_predictor_forward.1} parent=0 // loop_exit
    _

</llo_original>
